<compile_context>
chip_gen: v6e
topology: v6e:2x2x1
jax: 0.10.0
libtpu: 0.0.40
codegen_flags: <defaults>
</compile_context>

<pallas_src>
import jax
import jax.numpy as jnp
import numpy as np
from jax import lax
from jax.experimental import pallas as pl
from jax.experimental.pallas import tpu as pltpu

_MIB = 1024 * 1024


def _tpu_generation():
    """Best-effort TPU generation sniff ('v5' / 'v6' / 'v7' / None)."""
    try:
        kind = jax.devices()[0].device_kind.lower()
    except Exception:
        return None
    if "v7" in kind or "7x" in kind:
        return "v7"
    if "v6" in kind:
        return "v6"
    if "v5" in kind:
        return "v5"
    return None


def _choose_batch_block(B, S, *, min_steps=1, prefer_rows=256, max_rows=512):
    """Pick TB = batch elements fused per grid step.

    Constraints: TB divides B and TB*S is a multiple of 8 sublanes (or the
    block covers the full fused-row axis).  Preferences, in order: at least
    `min_steps` grid steps (2 on v7x so both TensorCores get work), rows within
    the VMEM-friendly window, rows aligned to the MXU M tile (256 on v6e/v7x,
    128 on v5e), then as many rows as possible to amortize the ~0.35us/step
    pipeline overhead.
    """
    cands = [tb for tb in range(1, B + 1)
             if B % tb == 0 and ((tb * S) % 8 == 0 or tb == B)]

    def score(tb):
        rows, steps = tb * S, B // tb
        s = 0.0
        if steps >= min_steps:
            s += 1000.0
        if rows <= max_rows:
            s += 500.0
        if rows % prefer_rows == 0:
            s += 50.0
        elif rows % 128 == 0:
            s += 20.0
        s += min(rows, max_rows) / float(max_rows)   # bigger is better, capped
        return s

    return max(cands, key=score)


def _make_kernel(D, Dp, mxu_dtype, approx_recip, masked):
    """Kernel body; all shape/dtype/path decisions are static (closed over)."""

    def kernel(*refs):
        if masked:
            (x_ref, x2_ref, bias_ref, wq_ref, bq_ref, wk_ref, bk_ref,
             wv_ref, bv_ref, gamma_ref, beta_ref, out_ref) = refs
        else:
            (x_ref, x2_ref, wq_ref, bq_ref, wk_ref, bk_ref,
             wv_ref, bv_ref, gamma_ref, beta_ref, out_ref) = refs

        x = x_ref[...]                          # (rows, Dp) f32 (residual path)
        xm = x.astype(mxu_dtype)
        x2m = x2_ref[...].astype(mxu_dtype)

        # Q/K/V projections (PyTorch Linear: y = x @ W^T + b).  W^T pre-cast /
        # pre-scaled in the wrapper: 1/kd folded into Wq/bq, sum(W1) into Wv/bv.
        q = jnp.dot(x2m, wq_ref[...], preferred_element_type=jnp.float32) + bq_ref[...]
        k = jnp.dot(xm, wk_ref[...], preferred_element_type=jnp.float32) + bk_ref[...]
        v = jnp.dot(xm, wv_ref[...], preferred_element_type=jnp.float32) + bv_ref[...]

        # One fused (rows, rows) scores matmul over all TB fused batch elements,
        # contracting the feature axes directly (no explicit k.T / XLU
        # transpose).  Cross-batch blocks are killed by the additive mask.
        scores = lax.dot_general(
            q.astype(mxu_dtype), k.astype(mxu_dtype),
            (((1,), (1,)), ((), ())), preferred_element_type=jnp.float32)
        if masked:
            scores = scores + bias_ref[...]     # 0 same-batch, -1e30 cross-batch

        # Softmax in f32; reciprocal routed to the EUP slot on the bf16 path.
        # TODO(synk): for S beyond a few hundred, tile the key axis with an
        # online-softmax (flash) accumulator instead of materializing
        # (rows, rows); trigger it earlier on v7x (64 MiB VMEM).
        m = jnp.max(scores, axis=-1, keepdims=True)
        p = jnp.exp(scores - m)
        denom = jnp.sum(p, axis=-1, keepdims=True)
        attn = p * pl.reciprocal(denom, approx=approx_recip)

        line = jnp.dot(attn.astype(mxu_dtype), v.astype(mxu_dtype),
                       preferred_element_type=jnp.float32)

        # linear1(num_head -> 1): all heads are identical in eval mode, so
        # cat(heads) @ W1^T == line * sum(W1) (folded into Wv/bv).  Its scalar
        # bias b1 is constant over the feature axis and cancels exactly in the
        # LayerNorm below, so it is dropped.
        # TODO(synk): training-mode per-head dropout is not modeled.
        res = line + x

        # Residual + LayerNorm over the *original* D features.  Padded lanes of
        # `res` are exactly zero, so full-lane sums only need a
        # (Dp - D) * mean^2 correction on the centered second moment.
        mean = jnp.sum(res, axis=-1, keepdims=True) * (1.0 / D)
        cent = res - mean
        sumsq = jnp.sum(cent * cent, axis=-1, keepdims=True)
        if Dp != D:
            sumsq = sumsq - float(Dp - D) * (mean * mean)
        inv = lax.rsqrt(sumsq * (1.0 / D) + 1e-5)
        out = cent * inv * gamma_ref[...] + beta_ref[...]
        out_ref[...] = out.astype(out_ref.dtype)

    return kernel


def cross_att_pallas(x, x2, params, num_head, *, mxu_dtype=jnp.bfloat16,
                     out_dtype=jnp.float32, single_buffer_weights=False):
    """Pallas forward of `cross_att` (inference semantics: dropout = identity)."""
    B, S, D = x.shape
    # torch: kd = sqrt(k.shape[-1] / num_head) with k already transposed
    #        -> sqrt(S / num_head).  Faithful to the module (scale depends on S).
    inv_kd = float(1.0 / np.sqrt(S / num_head))

    gen = _tpu_generation()
    TB = _choose_batch_block(
        B, S,
        min_steps=2 if gen == "v7" else 1,        # split grid across v7x's 2 TCs
        prefer_rows=128 if gen == "v5" else 256)  # MXU M-tile alignment
    rows = TB * S
    masked = TB > 1

    # Lane-dense feature axis: zero-pad D up to a multiple of 128.
    Dp = max(128, ((D + 127) // 128) * 128)
    pad = Dp - D

    # Fold linear1 (num_head -> 1) into V and 1/kd into Q (exact in eval mode).
    w1_sum = jnp.sum(params["w1"]).astype(jnp.float32)

    def pad_mat(a):
        return jnp.pad(a, ((0, pad), (0, pad))) if pad else a

    def pad_vec(a):
        a = a.reshape(1, D)
        return jnp.pad(a, ((0, 0), (0, pad))) if pad else a

    wq_t = pad_mat(params["wq"].T * inv_kd).astype(mxu_dtype)   # (Dp, Dp); y = x @ W^T
    wk_t = pad_mat(params["wk"].T).astype(mxu_dtype)
    wv_t = pad_mat(params["wv"].T * w1_sum).astype(mxu_dtype)
    bq = (pad_vec(params["bq"]) * inv_kd).astype(jnp.float32)
    bk = pad_vec(params["bk"]).astype(jnp.float32)
    bv = (pad_vec(params["bv"]) * w1_sum).astype(jnp.float32)
    gamma = pad_vec(params["gamma"]).astype(jnp.float32)
    beta = pad_vec(params["beta"]).astype(jnp.float32)

    # Fuse (batch, seq) so activation blocks are dense 2-D, lane-padded slabs.
    def pad_rows(a):
        a = a.reshape(B * S, D).astype(jnp.float32)
        return jnp.pad(a, ((0, 0), (0, pad))) if pad else a

    x_rows = pad_rows(x)
    # TODO(synk): accept x2 directly in bf16 from the producer to halve its DMA
    # bytes; x must stay f32 for the residual + LayerNorm.
    x2_rows = pad_rows(x2)

    row_spec = pl.BlockSpec((rows, Dp), lambda i: (i, 0))
    # Weight / vector / mask blocks are constant across the grid
    # (index_map -> (0, 0)), so Pallas keeps them resident.  On v7x with very
    # large D, set single_buffer_weights=True (halves their VMEM footprint) and
    # consider tiling the projection N/K dims as an extra grid axis.
    const_kwargs = {}
    if single_buffer_weights:
        const_kwargs["pipeline_mode"] = pl.Buffered(1)
    mat_spec = pl.BlockSpec((Dp, Dp), lambda i: (0, 0), **const_kwargs)
    vec_spec = pl.BlockSpec((1, Dp), lambda i: (0, 0), **const_kwargs)

    inputs = [x_rows, x2_rows]
    in_specs = [row_spec, row_spec]
    if masked:
        batch_ids = np.arange(rows) // S
        bias = np.where(batch_ids[:, None] == batch_ids[None, :],
                        0.0, -1e30).astype(np.float32)
        inputs.append(jnp.asarray(bias))
        in_specs.append(pl.BlockSpec((rows, rows), lambda i: (0, 0), **const_kwargs))
    inputs += [wq_t, bq, wk_t, bk, wv_t, bv, gamma, beta]
    in_specs += [mat_spec, vec_spec, mat_spec, vec_spec, mat_spec, vec_spec,
                 vec_spec, vec_spec]

    # VMEM budget: double-buffered activation blocks + (optionally single-
    # buffered) resident weights + the in-kernel (rows, rows) softmax
    # temporaries.  Cap per generation: v7x has 64 MiB physical -> stay <=48 MiB;
    # v5e/v6e have 128 MiB -> allow up to 96 MiB when blocks grow.
    w_itemsize = jnp.dtype(mxu_dtype).itemsize
    need = (2 * (3 * rows * Dp * 4)                                   # x, x2, out blocks
            + (1 if single_buffer_weights else 2) * 3 * Dp * Dp * w_itemsize
            + 4 * rows * rows * 4                                     # scores/p/mask temps
            + 8 * Dp * 4) + 2 * _MIB
    cap = 96 * _MIB if gen in ("v5", "v6") else 48 * _MIB
    vmem_limit = int(min(cap, max(32 * _MIB, need)))

    steps = B // TB
    cost = pl.CostEstimate(
        flops=2 * B * S * 3 * Dp * Dp + 4 * steps * rows * rows * Dp,
        transcendentals=steps * rows * (rows + 2),        # exp + recip + rsqrt
        bytes_accessed=(2 * B * S * Dp * 4
                        + B * S * Dp * jnp.dtype(out_dtype).itemsize
                        + 3 * Dp * Dp * w_itemsize + 5 * Dp * 4),
    )

    out = pl.pallas_call(
        _make_kernel(D, Dp, mxu_dtype,
                     approx_recip=jnp.dtype(mxu_dtype) != jnp.dtype(jnp.float32),
                     masked=masked),
        out_shape=jax.ShapeDtypeStruct((B * S, Dp), out_dtype),
        grid_spec=pltpu.PrefetchScalarGridSpec(
            num_scalar_prefetch=0,
            grid=(steps,),
            in_specs=in_specs,
            out_specs=row_spec,
        ),
        compiler_params=pltpu.CompilerParams(
            dimension_semantics=("parallel",),
            vmem_limit_bytes=vmem_limit,
        ),
        cost_estimate=cost,
    )(*inputs)

    return out[:, :D].reshape(B, S, D)


def cross_att_reference(x, x2, params, num_head):
    """Pure-JAX reference mirroring the PyTorch forward (eval mode)."""
    S = x.shape[-2]
    q = x2 @ params["wq"].T + params["bq"]
    k = x @ params["wk"].T + params["bk"]
    v = x @ params["wv"].T + params["bv"]
    kd = jnp.sqrt(jnp.float32(S) / num_head)
    scores = jnp.einsum("bsd,btd->bst", q, k) / kd
    attn = jax.nn.softmax(scores, axis=-1)
    line = jnp.einsum("bst,btd->bsd", attn, v)
    heads = jnp.stack([line] * num_head, axis=-1)            # (B, S, D, H)
    result = heads @ params["w1"].reshape(num_head, 1) + params["b1"]
    result = result[..., 0] + x
    mean = jnp.mean(result, axis=-1, keepdims=True)
    var = jnp.mean((result - mean) ** 2, axis=-1, keepdims=True)
    return (result - mean) / jnp.sqrt(var + 1e-5) * params["gamma"] + params["beta"]


def init_params(key, dim_input, num_head):
    ks = jax.random.split(key, 8)
    bound = 1.0 / np.sqrt(dim_input)
    bound1 = 1.0 / np.sqrt(num_head)
    u = lambda k, shape, b: jax.random.uniform(k, shape, jnp.float32, -b, b)
    return {
        "wq": u(ks[0], (dim_input, dim_input), bound),
        "bq": u(ks[1], (dim_input,), bound),
        "wk": u(ks[2], (dim_input, dim_input), bound),
        "bk": u(ks[3], (dim_input,), bound),
        "wv": u(ks[4], (dim_input, dim_input), bound),
        "bv": u(ks[5], (dim_input,), bound),
        "w1": u(ks[6], (1, num_head), bound1),
        "b1": u(ks[7], (1,), bound1),
        "gamma": jnp.ones((dim_input,), jnp.float32),
        "beta": jnp.zeros((dim_input,), jnp.float32),
    }


if __name__ == "__main__":
    B, S, D = 2, 8, 32
    NUM_HEAD = 4

    key = jax.random.PRNGKey(0)
    kx, kx2, kp = jax.random.split(key, 3)
    x = jax.random.normal(kx, (B, S, D), jnp.float32)
    x2 = jax.random.normal(kx2, (B, S, D), jnp.float32)
    params = init_params(kp, D, NUM_HEAD)

    ref = cross_att_reference(x, x2, params, NUM_HEAD)

    # Production path (all generations, incl. v5e): bf16 MXU operands,
    # f32 accumulation / softmax / LayerNorm, f32 output.
    out_bf16 = jax.block_until_ready(
        cross_att_pallas(x, x2, params, NUM_HEAD, mxu_dtype=jnp.bfloat16))
    np.testing.assert_allclose(np.asarray(out_bf16), np.asarray(ref),
                               rtol=3e-2, atol=3e-2)

    # Full-f32 MXU path: numerics check only (not a fast path on any
    # generation); uses the exact softmax reciprocal, tighter tolerance.
    out_f32 = jax.block_until_ready(
        cross_att_pallas(x, x2, params, NUM_HEAD, mxu_dtype=jnp.float32))
    np.testing.assert_allclose(np.asarray(out_f32), np.asarray(ref),
                               rtol=5e-3, atol=5e-3)

    print("KERNEL_OK")
</pallas_src>

<mosaic_0001>
module attributes {stable_mosaic.version = 11 : i64} {
  func.func @kernel(%arg0: i32, %arg1: memref<16x128xf32, #tpu.memory_space<vmem>>, %arg2: memref<16x128xf32, #tpu.memory_space<vmem>>, %arg3: memref<16x16xf32, #tpu.memory_space<vmem>>, %arg4: memref<128x128xbf16, #tpu.memory_space<vmem>>, %arg5: memref<1x128xf32, #tpu.memory_space<vmem>>, %arg6: memref<128x128xbf16, #tpu.memory_space<vmem>>, %arg7: memref<1x128xf32, #tpu.memory_space<vmem>>, %arg8: memref<128x128xbf16, #tpu.memory_space<vmem>>, %arg9: memref<1x128xf32, #tpu.memory_space<vmem>>, %arg10: memref<1x128xf32, #tpu.memory_space<vmem>>, %arg11: memref<1x128xf32, #tpu.memory_space<vmem>>, %arg12: memref<16x128xf32, #tpu.memory_space<vmem>>) attributes {dimension_semantics = [#tpu.dimension_semantics<parallel>], iteration_bounds = array<i64: 1>, scalar_prefetch = 0 : i64, scratch_operands = 0 : i64, tpu.core_type = #tpu.core_type<tc>, window_params = [{transform_indices = @transform_0, window_bounds = array<i64: 16, 128>}, {transform_indices = @transform_1, window_bounds = array<i64: 16, 128>}, {pipeline_mode = #tpu.pipeline_mode<synchronous>, transform_indices = @transform_2, window_bounds = array<i64: 16, 16>}, {pipeline_mode = #tpu.pipeline_mode<synchronous>, transform_indices = @transform_3, window_bounds = array<i64: 128, 128>}, {pipeline_mode = #tpu.pipeline_mode<synchronous>, transform_indices = @transform_4, window_bounds = array<i64: 1, 128>}, {pipeline_mode = #tpu.pipeline_mode<synchronous>, transform_indices = @transform_5, window_bounds = array<i64: 128, 128>}, {pipeline_mode = #tpu.pipeline_mode<synchronous>, transform_indices = @transform_6, window_bounds = array<i64: 1, 128>}, {pipeline_mode = #tpu.pipeline_mode<synchronous>, transform_indices = @transform_7, window_bounds = array<i64: 128, 128>}, {pipeline_mode = #tpu.pipeline_mode<synchronous>, transform_indices = @transform_8, window_bounds = array<i64: 1, 128>}, {pipeline_mode = #tpu.pipeline_mode<synchronous>, transform_indices = @transform_9, window_bounds = array<i64: 1, 128>}, {pipeline_mode = #tpu.pipeline_mode<synchronous>, transform_indices = @transform_10, window_bounds = array<i64: 1, 128>}, {transform_indices = @transform_11, window_bounds = array<i64: 16, 128>}]} {
    %c0 = arith.constant 0 : index
    %c0_0 = arith.constant 0 : index
    %0 = vector.load %arg1[%c0, %c0_0] : memref<16x128xf32, #tpu.memory_space<vmem>>, vector<16x128xf32>
    %1 = arith.truncf %0 : vector<16x128xf32> to vector<16x128xbf16>
    %c0_1 = arith.constant 0 : index
    %c0_2 = arith.constant 0 : index
    %2 = vector.load %arg2[%c0_1, %c0_2] : memref<16x128xf32, #tpu.memory_space<vmem>>, vector<16x128xf32>
    %3 = arith.truncf %2 : vector<16x128xf32> to vector<16x128xbf16>
    %c0_3 = arith.constant 0 : index
    %c0_4 = arith.constant 0 : index
    %4 = vector.load %arg4[%c0_3, %c0_4] : memref<128x128xbf16, #tpu.memory_space<vmem>>, vector<128x128xbf16>
    %cst = arith.constant dense<0.000000e+00> : vector<16x128xf32>
    %5 = tpu.matmul %3, %4, %cst {dimension_numbers = #tpu.dot_dimension_numbers<[1], [0], [0], [1], [0, 0, 1, 1], [], []>} : vector<16x128xbf16>, vector<128x128xbf16>, vector<16x128xf32> -> vector<16x128xf32>
    %c0_5 = arith.constant 0 : index
    %c0_6 = arith.constant 0 : index
    %6 = vector.load %arg5[%c0_5, %c0_6] : memref<1x128xf32, #tpu.memory_space<vmem>>, vector<1x128xf32>
    %7 = vector.broadcast %6 : vector<1x128xf32> to vector<16x128xf32>
    %8 = arith.addf %5, %7 : vector<16x128xf32>
    %c0_7 = arith.constant 0 : index
    %c0_8 = arith.constant 0 : index
    %9 = vector.load %arg6[%c0_7, %c0_8] : memref<128x128xbf16, #tpu.memory_space<vmem>>, vector<128x128xbf16>
    %cst_9 = arith.constant dense<0.000000e+00> : vector<16x128xf32>
    %10 = tpu.matmul %1, %9, %cst_9 {dimension_numbers = #tpu.dot_dimension_numbers<[1], [0], [0], [1], [0, 0, 1, 1], [], []>} : vector<16x128xbf16>, vector<128x128xbf16>, vector<16x128xf32> -> vector<16x128xf32>
    %c0_10 = arith.constant 0 : index
    %c0_11 = arith.constant 0 : index
    %11 = vector.load %arg7[%c0_10, %c0_11] : memref<1x128xf32, #tpu.memory_space<vmem>>, vector<1x128xf32>
    %12 = vector.broadcast %11 : vector<1x128xf32> to vector<16x128xf32>
    %13 = arith.addf %10, %12 : vector<16x128xf32>
    %c0_12 = arith.constant 0 : index
    %c0_13 = arith.constant 0 : index
    %14 = vector.load %arg8[%c0_12, %c0_13] : memref<128x128xbf16, #tpu.memory_space<vmem>>, vector<128x128xbf16>
    %cst_14 = arith.constant dense<0.000000e+00> : vector<16x128xf32>
    %15 = tpu.matmul %1, %14, %cst_14 {dimension_numbers = #tpu.dot_dimension_numbers<[1], [0], [0], [1], [0, 0, 1, 1], [], []>} : vector<16x128xbf16>, vector<128x128xbf16>, vector<16x128xf32> -> vector<16x128xf32>
    %c0_15 = arith.constant 0 : index
    %c0_16 = arith.constant 0 : index
    %16 = vector.load %arg9[%c0_15, %c0_16] : memref<1x128xf32, #tpu.memory_space<vmem>>, vector<1x128xf32>
    %17 = vector.broadcast %16 : vector<1x128xf32> to vector<16x128xf32>
    %18 = arith.addf %15, %17 : vector<16x128xf32>
    %19 = arith.truncf %8 : vector<16x128xf32> to vector<16x128xbf16>
    %20 = arith.truncf %13 : vector<16x128xf32> to vector<16x128xbf16>
    %cst_17 = arith.constant dense<0.000000e+00> : vector<16x16xf32>
    %21 = tpu.matmul %19, %20, %cst_17 {dimension_numbers = #tpu.dot_dimension_numbers<[1], [1], [0], [0], [0, 0, 1, 0], [], []>} : vector<16x128xbf16>, vector<16x128xbf16>, vector<16x16xf32> -> vector<16x16xf32>
    %c0_18 = arith.constant 0 : index
    %c0_19 = arith.constant 0 : index
    %22 = vector.load %arg3[%c0_18, %c0_19] : memref<16x16xf32, #tpu.memory_space<vmem>>, vector<16x16xf32>
    %23 = arith.addf %21, %22 : vector<16x16xf32>
    %cst_20 = arith.constant dense<0xFF800000> : vector<16xf32>
    %24 = vector.multi_reduction <maximumf>, %23, %cst_20 [1] : vector<16x16xf32> to vector<16xf32>
    %25 = vector.shape_cast %24 : vector<16xf32> to vector<16x1xf32>
    %26 = vector.broadcast %25 : vector<16x1xf32> to vector<16x16xf32>
    %27 = arith.subf %23, %26 : vector<16x16xf32>
    %28 = math.exp %27 : vector<16x16xf32>
    %cst_21 = arith.constant dense<0.000000e+00> : vector<16xf32>
    %29 = vector.multi_reduction <add>, %28, %cst_21 [1] : vector<16x16xf32> to vector<16xf32>
    %30 = vector.shape_cast %29 : vector<16xf32> to vector<16x1xf32>
    %31 = tpu.reciprocal %30 {approx = true} : vector<16x1xf32> -> vector<16x1xf32>
    %32 = vector.broadcast %31 : vector<16x1xf32> to vector<16x16xf32>
    %33 = arith.mulf %28, %32 : vector<16x16xf32>
    %34 = arith.truncf %33 : vector<16x16xf32> to vector<16x16xbf16>
    %35 = arith.truncf %18 : vector<16x128xf32> to vector<16x128xbf16>
    %cst_22 = arith.constant dense<0.000000e+00> : vector<16x128xf32>
    %36 = tpu.matmul %34, %35, %cst_22 {dimension_numbers = #tpu.dot_dimension_numbers<[1], [0], [0], [1], [0, 0, 1, 1], [], []>} : vector<16x16xbf16>, vector<16x128xbf16>, vector<16x128xf32> -> vector<16x128xf32>
    %37 = arith.addf %36, %0 : vector<16x128xf32>
    %cst_23 = arith.constant dense<0.000000e+00> : vector<16xf32>
    %38 = vector.multi_reduction <add>, %37, %cst_23 [1] : vector<16x128xf32> to vector<16xf32>
    %39 = vector.shape_cast %38 : vector<16xf32> to vector<16x1xf32>
    %cst_24 = arith.constant 3.125000e-02 : f32
    %40 = vector.broadcast %cst_24 : f32 to vector<16x1xf32>
    %41 = arith.mulf %39, %40 : vector<16x1xf32>
    %42 = vector.broadcast %41 : vector<16x1xf32> to vector<16x128xf32>
    %43 = arith.subf %37, %42 : vector<16x128xf32>
    %44 = arith.mulf %43, %43 : vector<16x128xf32>
    %cst_25 = arith.constant dense<0.000000e+00> : vector<16xf32>
    %45 = vector.multi_reduction <add>, %44, %cst_25 [1] : vector<16x128xf32> to vector<16xf32>
    %46 = vector.shape_cast %45 : vector<16xf32> to vector<16x1xf32>
    %47 = arith.mulf %41, %41 : vector<16x1xf32>
    %cst_26 = arith.constant 9.600000e+01 : f32
    %48 = vector.broadcast %cst_26 : f32 to vector<16x1xf32>
    %49 = arith.mulf %48, %47 : vector<16x1xf32>
    %50 = arith.subf %46, %49 : vector<16x1xf32>
    %cst_27 = arith.constant 3.125000e-02 : f32
    %51 = vector.broadcast %cst_27 : f32 to vector<16x1xf32>
    %52 = arith.mulf %50, %51 : vector<16x1xf32>
    %cst_28 = arith.constant 9.99999974E-6 : f32
    %53 = vector.broadcast %cst_28 : f32 to vector<16x1xf32>
    %54 = arith.addf %52, %53 : vector<16x1xf32>
    %55 = math.rsqrt %54 : vector<16x1xf32>
    %56 = vector.broadcast %55 : vector<16x1xf32> to vector<16x128xf32>
    %57 = arith.mulf %43, %56 : vector<16x128xf32>
    %c0_29 = arith.constant 0 : index
    %c0_30 = arith.constant 0 : index
    %58 = vector.load %arg10[%c0_29, %c0_30] : memref<1x128xf32, #tpu.memory_space<vmem>>, vector<1x128xf32>
    %59 = vector.broadcast %58 : vector<1x128xf32> to vector<16x128xf32>
    %60 = arith.mulf %57, %59 : vector<16x128xf32>
    %c0_31 = arith.constant 0 : index
    %c0_32 = arith.constant 0 : index
    %61 = vector.load %arg11[%c0_31, %c0_32] : memref<1x128xf32, #tpu.memory_space<vmem>>, vector<1x128xf32>
    %62 = vector.broadcast %61 : vector<1x128xf32> to vector<16x128xf32>
    %63 = arith.addf %60, %62 : vector<16x128xf32>
    %c0_33 = arith.constant 0 : index
    %c0_34 = arith.constant 0 : index
    %64 = vector.load %arg12[%c0_33, %c0_34] : memref<16x128xf32, #tpu.memory_space<vmem>>, vector<16x128xf32>
    tpu.vector_store %arg12[%c0_33, %c0_34], %63 {strides = array<i32>} : memref<16x128xf32, #tpu.memory_space<vmem>>, vector<16x128xf32>,
    return
  }
  func.func @transform_0(%arg0: i32) -> (i32, i32) {
    %c0_i32 = arith.constant 0 : i32
    %c0_i32_0 = arith.constant 0 : i32
    return %arg0, %c0_i32 : i32, i32
  }
  func.func @transform_1(%arg0: i32) -> (i32, i32) {
    %c0_i32 = arith.constant 0 : i32
    %c0_i32_0 = arith.constant 0 : i32
    return %arg0, %c0_i32 : i32, i32
  }
  func.func @transform_2(%arg0: i32) -> (i32, i32) {
    %c0_i32 = arith.constant 0 : i32
    %c0_i32_0 = arith.constant 0 : i32
    %c0_i32_1 = arith.constant 0 : i32
    return %c0_i32, %c0_i32_0 : i32, i32
  }
  func.func @transform_3(%arg0: i32) -> (i32, i32) {
    %c0_i32 = arith.constant 0 : i32
    %c0_i32_0 = arith.constant 0 : i32
    %c0_i32_1 = arith.constant 0 : i32
    return %c0_i32, %c0_i32_0 : i32, i32
  }
  func.func @transform_4(%arg0: i32) -> (i32, i32) {
    %c0_i32 = arith.constant 0 : i32
    %c0_i32_0 = arith.constant 0 : i32
    %c0_i32_1 = arith.constant 0 : i32
    return %c0_i32, %c0_i32_0 : i32, i32
  }
  func.func @transform_5(%arg0: i32) -> (i32, i32) {
    %c0_i32 = arith.constant 0 : i32
    %c0_i32_0 = arith.constant 0 : i32
    %c0_i32_1 = arith.constant 0 : i32
    return %c0_i32, %c0_i32_0 : i32, i32
  }
  func.func @transform_6(%arg0: i32) -> (i32, i32) {
    %c0_i32 = arith.constant 0 : i32
    %c0_i32_0 = arith.constant 0 : i32
    %c0_i32_1 = arith.constant 0 : i32
    return %c0_i32, %c0_i32_0 : i32, i32
  }
  func.func @transform_7(%arg0: i32) -> (i32, i32) {
    %c0_i32 = arith.constant 0 : i32
    %c0_i32_0 = arith.constant 0 : i32
    %c0_i32_1 = arith.constant 0 : i32
    return %c0_i32, %c0_i32_0 : i32, i32
  }
  func.func @transform_8(%arg0: i32) -> (i32, i32) {
    %c0_i32 = arith.constant 0 : i32
    %c0_i32_0 = arith.constant 0 : i32
    %c0_i32_1 = arith.constant 0 : i32
    return %c0_i32, %c0_i32_0 : i32, i32
  }
  func.func @transform_9(%arg0: i32) -> (i32, i32) {
    %c0_i32 = arith.constant 0 : i32
    %c0_i32_0 = arith.constant 0 : i32
    %c0_i32_1 = arith.constant 0 : i32
    return %c0_i32, %c0_i32_0 : i32, i32
  }
  func.func @transform_10(%arg0: i32) -> (i32, i32) {
    %c0_i32 = arith.constant 0 : i32
    %c0_i32_0 = arith.constant 0 : i32
    %c0_i32_1 = arith.constant 0 : i32
    return %c0_i32, %c0_i32_0 : i32, i32
  }
  func.func @transform_11(%arg0: i32) -> (i32, i32) {
    %c0_i32 = arith.constant 0 : i32
    %c0_i32_0 = arith.constant 0 : i32
    return %arg0, %c0_i32 : i32, i32
  }
}

</mosaic_0001>

<llo_original>
// kernel: tpu_custom_call.1
$region0: #{tpu_custom_call.1}
  #allocation0 [shape = 'u32[]', space=smem, size = 0x4, offset = 0x4, fixed_abs, tag = 'smem constant byte address 0x4 - core index']
  #allocation1 [shape = 'u32[144,128]{1,0:T(1,128)}', space=vmem, size = 0x12000, scoped, tag = 'internal scratch']
  %s0 = inlined_call_operand.hbm [shape: f32[16,128], index: 0, kind: input, shape index: {}]
  %s1 = inlined_call_operand.hbm [shape: f32[16,128], index: 1, kind: input, shape index: {}]
  %s2 = inlined_call_operand.hbm [shape: f32[16,16], index: 2, kind: input, shape index: {}]
  %s3 = inlined_call_operand.hbm [shape: bf16[128,128], index: 3, kind: input, shape index: {}]
  %s4 = inlined_call_operand.vmem [shape: f32[1,128], index: 4, kind: input, shape index: {}]
  %s5 = inlined_call_operand.hbm [shape: bf16[128,128], index: 5, kind: input, shape index: {}]
  %s6 = inlined_call_operand.vmem [shape: f32[1,128], index: 6, kind: input, shape index: {}]
  %s7 = inlined_call_operand.hbm [shape: bf16[128,128], index: 7, kind: input, shape index: {}]
  %s8 = inlined_call_operand.vmem [shape: f32[1,128], index: 8, kind: input, shape index: {}]
  %s9 = inlined_call_operand.vmem [shape: f32[1,128], index: 9, kind: input, shape index: {}]
  %s10 = inlined_call_operand.vmem [shape: f32[1,128], index: 10, kind: input, shape index: {}]
  %s11 = inlined_call_operand.hbm [shape: f32[16,128], index: 11, kind: output, shape index: {}]
  %s12 = sld [smem:[#allocation0]]
  $region78: #{tpu_custom_call.1} parent=0
    _
  %s14 = ssub.s32 1, %s12
  %s15 = scalar_select 0, %s14, %s12
  $region1: #{tpu_custom_call.1} parent=0
    #allocation2 [shape = 'u8[8192]{0}', space=vmem, size = 0x2000, scoped, tag = 'input window, operand 0, single buffered']
    #allocation3 [shape = 's32[1]{0}', space=sflag, size = 0x4, scoped, tag = 'scoped memory for tpu_custom_call.1']
    #allocation4 [shape = 's32[1]{0}', space=sflag, size = 0x4, scoped, tag = 'scoped memory for tpu_custom_call.1']
    #allocation5 [shape = 'u8[8192]{0}', space=vmem, size = 0x2000, scoped, tag = 'input window, operand 1, single buffered']
    #allocation6 [shape = 's32[1]{0}', space=sflag, size = 0x4, scoped, tag = 'scoped memory for tpu_custom_call.1']
    #allocation7 [shape = 'u8[8192]{0}', space=vmem, size = 0x2000, scoped, tag = 'input window, operand 2, single buffered']
    #allocation8 [shape = 'u8[32768]{0}', space=vmem, size = 0x8000, scoped, tag = 'input window, operand 3, single buffered']
    #allocation9 [shape = 's32[1]{0}', space=sflag, size = 0x4, scoped, tag = 'scoped memory for tpu_custom_call.1']
    #allocation10 [shape = 'u8[32768]{0}', space=vmem, size = 0x8000, scoped, tag = 'input window, operand 5, single buffered']
    #allocation11 [shape = 'u8[32768]{0}', space=vmem, size = 0x8000, scoped, tag = 'input window, operand 7, single buffered']
    #allocation12 [shape = 's32[1]{0}', space=sflag, size = 0x4, scoped, tag = 'scoped memory for tpu_custom_call.1']
    #allocation13 [shape = 'u8[8192]{0}', space=vmem, size = 0x2000, scoped, tag = 'output window, operand 0, single buffered']
    %16 = vsyncpa [#allocation3], 0
    %17 = vsyncpa [#allocation6], 0
    %18 = vsyncpa [#allocation9], 0
    %19 = vsyncpa [#allocation12], 0
    %20 = vsyncpa [#allocation4], 0
    // Predicated region
    $region2: #{tpu_custom_call.1} parent=1 // pred_check
      _
    $region3: #{tpu_custom_call.1} parent=1 // pred_check_branch
      %22 = sbr.rel (0) target = $region5
    $region4: #{tpu_custom_call.1} parent=1 // pred_region
      %s24 = ssub.s32 256, 256
      %25 = vsyncadd [#allocation3], %s24
      %s26 = sshll.u32 [#allocation2], 4
      %s27 = int_to_ptr.vmem [resolvable:$true] %s26
      %32 = dma.hbm_to_vmem [thread:$0]  %s0, 256, %s27, [#allocation3], 128, 128, 8
    $region5: #{tpu_custom_call.1} parent=1 // pred_fallthru
      _
    // Predicated region
    $region6: #{tpu_custom_call.1} parent=1 // pred_check
      _
    $region7: #{tpu_custom_call.1} parent=1 // pred_check_branch
      %34 = sbr.rel (0) target = $region9
    $region8: #{tpu_custom_call.1} parent=1 // pred_region
      %s36 = ssub.s32 256, 256
      %37 = vsyncadd [#allocation6], %s36
      %s38 = sshll.u32 [#allocation5], 4
      %s39 = int_to_ptr.vmem [resolvable:$true] %s38
      %44 = dma.hbm_to_vmem [thread:$0]  %s1, 256, %s39, [#allocation6], 128, 128, 8
    $region9: #{tpu_custom_call.1} parent=1 // pred_fallthru
      _
    // Predicated region
    $region10: #{tpu_custom_call.1} parent=1 // pred_check
      _
    $region11: #{tpu_custom_call.1} parent=1 // pred_check_branch
      %46 = sbr.rel (0) target = $region13
    $region12: #{tpu_custom_call.1} parent=1 // pred_region
      %s48 = ssub.s32 256, 256
      %49 = vsyncadd [#allocation6], %s48
      %s50 = sshll.u32 [#allocation7], 4
      %s51 = int_to_ptr.vmem [resolvable:$true] %s50
      %56 = dma.hbm_to_vmem [thread:$0]  %s2, 256, %s51, [#allocation6], 128, 128, 8
    $region13: #{tpu_custom_call.1} parent=1 // pred_fallthru
      _
    // Predicated region
    $region14: #{tpu_custom_call.1} parent=1 // pred_check
      _
    $region15: #{tpu_custom_call.1} parent=1 // pred_check_branch
      %58 = sbr.rel (0) target = $region17
    $region16: #{tpu_custom_call.1} parent=1 // pred_region
      %s60 = ssub.s32 1024, 1024
      %61 = vsyncadd [#allocation9], %s60
      %s62 = sshll.u32 [#allocation8], 4
      %s63 = int_to_ptr.vmem [resolvable:$true] %s62
      %68 = dma.hbm_to_vmem [thread:$0]  %s3, 1024, %s63, [#allocation9], 64, 64, 4
    $region17: #{tpu_custom_call.1} parent=1 // pred_fallthru
      _
    // Predicated region
    $region18: #{tpu_custom_call.1} parent=1 // pred_check
      _
    $region19: #{tpu_custom_call.1} parent=1 // pred_check_branch
      %70 = sbr.rel (0) target = $region21
    $region20: #{tpu_custom_call.1} parent=1 // pred_region
      _
    $region21: #{tpu_custom_call.1} parent=1 // pred_fallthru
      _
    // Predicated region
    $region22: #{tpu_custom_call.1} parent=1 // pred_check
      _
    $region23: #{tpu_custom_call.1} parent=1 // pred_check_branch
      %72 = sbr.rel (0) target = $region25
    $region24: #{tpu_custom_call.1} parent=1 // pred_region
      %s74 = ssub.s32 1024, 1024
      %75 = vsyncadd [#allocation9], %s74
      %s76 = sshll.u32 [#allocation10], 4
      %s77 = int_to_ptr.vmem [resolvable:$true] %s76
      %82 = dma.hbm_to_vmem [thread:$0]  %s5, 1024, %s77, [#allocation9], 64, 64, 4
    $region25: #{tpu_custom_call.1} parent=1 // pred_fallthru
      _
    // Predicated region
    $region26: #{tpu_custom_call.1} parent=1 // pred_check
      _
    $region27: #{tpu_custom_call.1} parent=1 // pred_check_branch
      %84 = sbr.rel (0) target = $region29
    $region28: #{tpu_custom_call.1} parent=1 // pred_region
      _
    $region29: #{tpu_custom_call.1} parent=1 // pred_fallthru
      _
    // Predicated region
    $region30: #{tpu_custom_call.1} parent=1 // pred_check
      _
    $region31: #{tpu_custom_call.1} parent=1 // pred_check_branch
      %86 = sbr.rel (0) target = $region33
    $region32: #{tpu_custom_call.1} parent=1 // pred_region
      %s88 = ssub.s32 1024, 1024
      %89 = vsyncadd [#allocation12], %s88
      %s90 = sshll.u32 [#allocation11], 4
      %s91 = int_to_ptr.vmem [resolvable:$true] %s90
      %96 = dma.hbm_to_vmem [thread:$0]  %s7, 1024, %s91, [#allocation12], 64, 64, 4
    $region33: #{tpu_custom_call.1} parent=1 // pred_fallthru
      _
    // Predicated region
    $region34: #{tpu_custom_call.1} parent=1 // pred_check
      _
    $region35: #{tpu_custom_call.1} parent=1 // pred_check_branch
      %98 = sbr.rel (0) target = $region37
    $region36: #{tpu_custom_call.1} parent=1 // pred_region
      _
    $region37: #{tpu_custom_call.1} parent=1 // pred_fallthru
      _
    // Predicated region
    $region38: #{tpu_custom_call.1} parent=1 // pred_check
      _
    $region39: #{tpu_custom_call.1} parent=1 // pred_check_branch
      %100 = sbr.rel (0) target = $region41
    $region40: #{tpu_custom_call.1} parent=1 // pred_region
      _
    $region41: #{tpu_custom_call.1} parent=1 // pred_fallthru
      _
    // Predicated region
    $region42: #{tpu_custom_call.1} parent=1 // pred_check
      _
    $region43: #{tpu_custom_call.1} parent=1 // pred_check_branch
      %102 = sbr.rel (0) target = $region45
    $region44: #{tpu_custom_call.1} parent=1 // pred_region
      _
    $region45: #{tpu_custom_call.1} parent=1 // pred_fallthru
      _
    // Predicated region
    $region46: #{tpu_custom_call.1} parent=1 // pred_check
      _
    $region47: #{tpu_custom_call.1} parent=1 // pred_check_branch
      %104 = sbr.rel (0) target = $region49
    $region48: #{tpu_custom_call.1} parent=1 // pred_region
      %105 = dma.done [#allocation3], 256
    $region49: #{tpu_custom_call.1} parent=1 // pred_fallthru
      _
    // Predicated region
    $region50: #{tpu_custom_call.1} parent=1 // pred_check
      _
    $region51: #{tpu_custom_call.1} parent=1 // pred_check_branch
      %107 = sbr.rel (0) target = $region53
    $region52: #{tpu_custom_call.1} parent=1 // pred_region
      %108 = dma.done [#allocation6], 256
    $region53: #{tpu_custom_call.1} parent=1 // pred_fallthru
      _
    // Predicated region
    $region54: #{tpu_custom_call.1} parent=1 // pred_check
      _
    $region55: #{tpu_custom_call.1} parent=1 // pred_check_branch
      %110 = sbr.rel (0) target = $region57
    $region56: #{tpu_custom_call.1} parent=1 // pred_region
      %111 = dma.done [#allocation6], 256
    $region57: #{tpu_custom_call.1} parent=1 // pred_fallthru
      _
    // Predicated region
    $region58: #{tpu_custom_call.1} parent=1 // pred_check
      _
    $region59: #{tpu_custom_call.1} parent=1 // pred_check_branch
      %113 = sbr.rel (0) target = $region61
    $region60: #{tpu_custom_call.1} parent=1 // pred_region
      %114 = dma.done [#allocation9], 1024
    $region61: #{tpu_custom_call.1} parent=1 // pred_fallthru
      _
    // Predicated region
    $region62: #{tpu_custom_call.1} parent=1 // pred_check
      _
    $region63: #{tpu_custom_call.1} parent=1 // pred_check_branch
      %116 = sbr.rel (0) target = $region65
    $region64: #{tpu_custom_call.1} parent=1 // pred_region
      %117 = dma.done [#allocation9], 1024
    $region65: #{tpu_custom_call.1} parent=1 // pred_fallthru
      _
    // Predicated region
    $region66: #{tpu_custom_call.1} parent=1 // pred_check
      _
    $region67: #{tpu_custom_call.1} parent=1 // pred_check_branch
      %119 = sbr.rel (0) target = $region69
    $region68: #{tpu_custom_call.1} parent=1 // pred_region
      %120 = dma.done [#allocation12], 1024
    $region69: #{tpu_custom_call.1} parent=1 // pred_fallthru
      _
    %v122 = vld [vmem:[#allocation2] sm:$0xff]
    %v123 = vld [vmem:[#allocation2 + $0x8] sm:$0xff]
    %v124 = vpack.c.bf16 %v123, %v122
    %v125 = vld [vmem:[#allocation5] sm:$0xff]
    %v126 = vld [vmem:[#allocation5 + $0x8] sm:$0xff]
    %v127 = vpack.c.bf16 %v126, %v125
    %v128 = vld [vmem:[#allocation8] sm:$0xf]
    %v129 = vld [vmem:[#allocation8 + $0x4] sm:$0xf]
    %v130 = vld [vmem:[#allocation8 + $0x8] sm:$0xf]
    %v131 = vld [vmem:[#allocation8 + $0xc] sm:$0xf]
    %v132 = vld [vmem:[#allocation8 + $0x10] sm:$0xf]
    %v133 = vld [vmem:[#allocation8 + $0x14] sm:$0xf]
    %v134 = vld [vmem:[#allocation8 + $0x18] sm:$0xf]
    %v135 = vld [vmem:[#allocation8 + $0x1c] sm:$0xf]
    %v136 = vld [vmem:[#allocation8 + $0x20] sm:$0xf]
    %v137 = vld [vmem:[#allocation8 + $0x24] sm:$0xf]
    %v138 = vld [vmem:[#allocation8 + $0x28] sm:$0xf]
    %v139 = vld [vmem:[#allocation8 + $0x2c] sm:$0xf]
    %v140 = vld [vmem:[#allocation8 + $0x30] sm:$0xf]
    %v141 = vld [vmem:[#allocation8 + $0x34] sm:$0xf]
    %v142 = vld [vmem:[#allocation8 + $0x38] sm:$0xf]
    %v143 = vld [vmem:[#allocation8 + $0x3c] sm:$0xf]
    %v144 = vld [vmem:[%s4] sm:$0x1]
    %v146 = vlaneseq
    %v147 = vshrl.u32 %v146, 7
    %v148 = vsub.s32 0, %v147
    %v149 = vrot.slane %v144, %v148
    %v167 = vunpack.c.l.b16 %v128
    %v168 = vunpack.c.l.b16 %v129
    %v169 = vunpack.c.l.b16 %v130
    %v170 = vunpack.c.l.b16 %v131
    %v171 = vunpack.c.l.b16 %v132
    %v172 = vunpack.c.l.b16 %v133
    %v173 = vunpack.c.l.b16 %v134
    %v174 = vunpack.c.l.b16 %v135
    %v175 = vunpack.c.l.b16 %v136
    %v176 = vunpack.c.l.b16 %v137
    %v177 = vunpack.c.l.b16 %v138
    %v178 = vunpack.c.l.b16 %v139
    %v179 = vunpack.c.l.b16 %v140
    %v180 = vunpack.c.l.b16 %v141
    %v181 = vunpack.c.l.b16 %v142
    %v182 = vunpack.c.l.b16 %v143
    %v183 = vpack.c.b16 %v168, %v167
    %v184 = vpack.c.b16 %v170, %v169
    %v185 = vpack.c.b16 %v172, %v171
    %v186 = vpack.c.b16 %v174, %v173
    %v187 = vpack.c.b16 %v176, %v175
    %v188 = vpack.c.b16 %v178, %v177
    %v189 = vpack.c.b16 %v180, %v179
    %v190 = vpack.c.b16 %v182, %v181
    %199 = vmatprep.subr.bf16.mxu0 0
    %200 = vmatpush1.bf16.msra.mxu0 %v190
    %201 = vmatprep.subr.bf16.mxu0 0
    %202 = vmatpush1.bf16.msra.mxu0 %v189
    %203 = vmatprep.subr.bf16.mxu0 0
    %204 = vmatpush1.bf16.msra.mxu0 %v188
    %205 = vmatprep.subr.bf16.mxu0 0
    %206 = vmatpush1.bf16.msra.mxu0 %v187
    %207 = vmatprep.subr.bf16.mxu0 0
    %208 = vmatpush1.bf16.msra.mxu0 %v186
    %209 = vmatprep.subr.bf16.mxu0 0
    %210 = vmatpush1.bf16.msra.mxu0 %v185
    %211 = vmatprep.subr.bf16.mxu0 0
    %212 = vmatpush1.bf16.msra.mxu0 %v184
    %213 = vmatprep.subr.bf16.mxu0 0
    %214 = vmatpush1.bf16.msra.mxu0 %v183
    %215 = vmatprep.subr.bf16.mxu0 0
    %216 = vmatpush2.bf16.msra.mxu0 0
    %217 = vmatprep.subr.bf16.mxu0 0
    %218 = vmatpush2.bf16.msra.mxu0 0
    %219 = vmatprep.subr.bf16.mxu0 0
    %220 = vmatpush2.bf16.msra.mxu0 0
    %221 = vmatprep.subr.bf16.mxu0 0
    %222 = vmatpush2.bf16.msra.mxu0 0
    %223 = vmatprep.subr.bf16.mxu0 0
    %224 = vmatpush2.bf16.msra.mxu0 0
    %225 = vmatprep.subr.bf16.mxu0 0
    %226 = vmatpush2.bf16.msra.mxu0 0
    %227 = vmatprep.subr.bf16.mxu0 0
    %228 = vmatpush2.bf16.msra.mxu0 0
    %229 = vmatprep.subr.bf16.mxu0 0
    %230 = vmatpush2.bf16.msra.mxu0 0
    %231 = vmatprep.mubr.bf16.mxu0 0
    %232 = vmatmul.mubr.bf16.gmra.mxu0 %v127
    %v233 = vpop.f32.mrf.mxu0
    %v234 = vadd.f32 %v149, %v233
    %v235 = vpop.f32.mrf.mxu0
    %v236 = vpop.f32.mrf.mxu0
    %v237 = vadd.f32 %v149, %v236
    %v238 = vpop.f32.mrf.mxu0
    %239 = vdwg.mxu0
    %v240 = vld [vmem:[#allocation10] sm:$0xf]
    %v241 = vld [vmem:[#allocation10 + $0x4] sm:$0xf]
    %v242 = vld [vmem:[#allocation10 + $0x8] sm:$0xf]
    %v243 = vld [vmem:[#allocation10 + $0xc] sm:$0xf]
    %v244 = vld [vmem:[#allocation10 + $0x10] sm:$0xf]
    %v245 = vld [vmem:[#allocation10 + $0x14] sm:$0xf]
    %v246 = vld [vmem:[#allocation10 + $0x18] sm:$0xf]
    %v247 = vld [vmem:[#allocation10 + $0x1c] sm:$0xf]
    %v248 = vld [vmem:[#allocation10 + $0x20] sm:$0xf]
    %v249 = vld [vmem:[#allocation10 + $0x24] sm:$0xf]
    %v250 = vld [vmem:[#allocation10 + $0x28] sm:$0xf]
    %v251 = vld [vmem:[#allocation10 + $0x2c] sm:$0xf]
    %v252 = vld [vmem:[#allocation10 + $0x30] sm:$0xf]
    %v253 = vld [vmem:[#allocation10 + $0x34] sm:$0xf]
    %v254 = vld [vmem:[#allocation10 + $0x38] sm:$0xf]
    %v255 = vld [vmem:[#allocation10 + $0x3c] sm:$0xf]
    %v256 = vld [vmem:[%s6] sm:$0x1]
    %v258 = vlaneseq
    %v259 = vshrl.u32 %v258, 7
    %v260 = vsub.s32 0, %v259
    %v261 = vrot.slane %v256, %v260
    %v279 = vunpack.c.l.b16 %v240
    %v280 = vunpack.c.l.b16 %v241
    %v281 = vunpack.c.l.b16 %v242
    %v282 = vunpack.c.l.b16 %v243
    %v283 = vunpack.c.l.b16 %v244
    %v284 = vunpack.c.l.b16 %v245
    %v285 = vunpack.c.l.b16 %v246
    %v286 = vunpack.c.l.b16 %v247
    %v287 = vunpack.c.l.b16 %v248
    %v288 = vunpack.c.l.b16 %v249
    %v289 = vunpack.c.l.b16 %v250
    %v290 = vunpack.c.l.b16 %v251
    %v291 = vunpack.c.l.b16 %v252
    %v292 = vunpack.c.l.b16 %v253
    %v293 = vunpack.c.l.b16 %v254
    %v294 = vunpack.c.l.b16 %v255
    %v295 = vpack.c.b16 %v280, %v279
    %v296 = vpack.c.b16 %v282, %v281
    %v297 = vpack.c.b16 %v284, %v283
    %v298 = vpack.c.b16 %v286, %v285
    %v299 = vpack.c.b16 %v288, %v287
    %v300 = vpack.c.b16 %v290, %v289
    %v301 = vpack.c.b16 %v292, %v291
    %v302 = vpack.c.b16 %v294, %v293
    %311 = vmatprep.subr.bf16.mxu0 0
    %312 = vmatpush1.bf16.msra.mxu0 %v302
    %313 = vmatprep.subr.bf16.mxu0 0
    %314 = vmatpush1.bf16.msra.mxu0 %v301
    %315 = vmatprep.subr.bf16.mxu0 0
    %316 = vmatpush1.bf16.msra.mxu0 %v300
    %317 = vmatprep.subr.bf16.mxu0 0
    %318 = vmatpush1.bf16.msra.mxu0 %v299
    %319 = vmatprep.subr.bf16.mxu0 0
    %320 = vmatpush1.bf16.msra.mxu0 %v298
    %321 = vmatprep.subr.bf16.mxu0 0
    %322 = vmatpush1.bf16.msra.mxu0 %v297
    %323 = vmatprep.subr.bf16.mxu0 0
    %324 = vmatpush1.bf16.msra.mxu0 %v296
    %325 = vmatprep.subr.bf16.mxu0 0
    %326 = vmatpush1.bf16.msra.mxu0 %v295
    %327 = vmatprep.subr.bf16.mxu0 0
    %328 = vmatpush2.bf16.msra.mxu0 0
    %329 = vmatprep.subr.bf16.mxu0 0
    %330 = vmatpush2.bf16.msra.mxu0 0
    %331 = vmatprep.subr.bf16.mxu0 0
    %332 = vmatpush2.bf16.msra.mxu0 0
    %333 = vmatprep.subr.bf16.mxu0 0
    %334 = vmatpush2.bf16.msra.mxu0 0
    %335 = vmatprep.subr.bf16.mxu0 0
    %336 = vmatpush2.bf16.msra.mxu0 0
    %337 = vmatprep.subr.bf16.mxu0 0
    %338 = vmatpush2.bf16.msra.mxu0 0
    %339 = vmatprep.subr.bf16.mxu0 0
    %340 = vmatpush2.bf16.msra.mxu0 0
    %341 = vmatprep.subr.bf16.mxu0 0
    %342 = vmatpush2.bf16.msra.mxu0 0
    %343 = vmatprep.mubr.bf16.mxu0 0
    %344 = vmatmul.mubr.bf16.gmra.mxu0 %v124
    %v345 = vpop.f32.mrf.mxu0
    %v346 = vadd.f32 %v261, %v345
    %v347 = vpop.f32.mrf.mxu0
    %v348 = vpop.f32.mrf.mxu0
    %v349 = vadd.f32 %v261, %v348
    %v350 = vpop.f32.mrf.mxu0
    %351 = vdwg.mxu0
    %v352 = vld [vmem:[#allocation11] sm:$0xf]
    %v353 = vld [vmem:[#allocation11 + $0x4] sm:$0xf]
    %v354 = vld [vmem:[#allocation11 + $0x8] sm:$0xf]
    %v355 = vld [vmem:[#allocation11 + $0xc] sm:$0xf]
    %v356 = vld [vmem:[#allocation11 + $0x10] sm:$0xf]
    %v357 = vld [vmem:[#allocation11 + $0x14] sm:$0xf]
    %v358 = vld [vmem:[#allocation11 + $0x18] sm:$0xf]
    %v359 = vld [vmem:[#allocation11 + $0x1c] sm:$0xf]
    %v360 = vld [vmem:[#allocation11 + $0x20] sm:$0xf]
    %v361 = vld [vmem:[#allocation11 + $0x24] sm:$0xf]
    %v362 = vld [vmem:[#allocation11 + $0x28] sm:$0xf]
    %v363 = vld [vmem:[#allocation11 + $0x2c] sm:$0xf]
    %v364 = vld [vmem:[#allocation11 + $0x30] sm:$0xf]
    %v365 = vld [vmem:[#allocation11 + $0x34] sm:$0xf]
    %v366 = vld [vmem:[#allocation11 + $0x38] sm:$0xf]
    %v367 = vld [vmem:[#allocation11 + $0x3c] sm:$0xf]
    %v368 = vld [vmem:[%s8] sm:$0x1]
    %v370 = vlaneseq
    %v371 = vshrl.u32 %v370, 7
    %v372 = vsub.s32 0, %v371
    %v373 = vrot.slane %v368, %v372
    %v391 = vunpack.c.l.b16 %v352
    %v392 = vunpack.c.l.b16 %v353
    %v393 = vunpack.c.l.b16 %v354
    %v394 = vunpack.c.l.b16 %v355
    %v395 = vunpack.c.l.b16 %v356
    %v396 = vunpack.c.l.b16 %v357
    %v397 = vunpack.c.l.b16 %v358
    %v398 = vunpack.c.l.b16 %v359
    %v399 = vunpack.c.l.b16 %v360
    %v400 = vunpack.c.l.b16 %v361
    %v401 = vunpack.c.l.b16 %v362
    %v402 = vunpack.c.l.b16 %v363
    %v403 = vunpack.c.l.b16 %v364
    %v404 = vunpack.c.l.b16 %v365
    %v405 = vunpack.c.l.b16 %v366
    %v406 = vunpack.c.l.b16 %v367
    %v407 = vpack.c.b16 %v392, %v391
    %v408 = vpack.c.b16 %v394, %v393
    %v409 = vpack.c.b16 %v396, %v395
    %v410 = vpack.c.b16 %v398, %v397
    %v411 = vpack.c.b16 %v400, %v399
    %v412 = vpack.c.b16 %v402, %v401
    %v413 = vpack.c.b16 %v404, %v403
    %v414 = vpack.c.b16 %v406, %v405
    %423 = vmatprep.subr.bf16.mxu0 0
    %424 = vmatpush1.bf16.msra.mxu0 %v414
    %425 = vmatprep.subr.bf16.mxu0 0
    %426 = vmatpush1.bf16.msra.mxu0 %v413
    %427 = vmatprep.subr.bf16.mxu0 0
    %428 = vmatpush1.bf16.msra.mxu0 %v412
    %429 = vmatprep.subr.bf16.mxu0 0
    %430 = vmatpush1.bf16.msra.mxu0 %v411
    %431 = vmatprep.subr.bf16.mxu0 0
    %432 = vmatpush1.bf16.msra.mxu0 %v410
    %433 = vmatprep.subr.bf16.mxu0 0
    %434 = vmatpush1.bf16.msra.mxu0 %v409
    %435 = vmatprep.subr.bf16.mxu0 0
    %436 = vmatpush1.bf16.msra.mxu0 %v408
    %437 = vmatprep.subr.bf16.mxu0 0
    %438 = vmatpush1.bf16.msra.mxu0 %v407
    %439 = vmatprep.subr.bf16.mxu0 0
    %440 = vmatpush2.bf16.msra.mxu0 0
    %441 = vmatprep.subr.bf16.mxu0 0
    %442 = vmatpush2.bf16.msra.mxu0 0
    %443 = vmatprep.subr.bf16.mxu0 0
    %444 = vmatpush2.bf16.msra.mxu0 0
    %445 = vmatprep.subr.bf16.mxu0 0
    %446 = vmatpush2.bf16.msra.mxu0 0
    %447 = vmatprep.subr.bf16.mxu0 0
    %448 = vmatpush2.bf16.msra.mxu0 0
    %449 = vmatprep.subr.bf16.mxu0 0
    %450 = vmatpush2.bf16.msra.mxu0 0
    %451 = vmatprep.subr.bf16.mxu0 0
    %452 = vmatpush2.bf16.msra.mxu0 0
    %453 = vmatprep.subr.bf16.mxu0 0
    %454 = vmatpush2.bf16.msra.mxu0 0
    %455 = vmatprep.mubr.bf16.mxu0 0
    %456 = vmatmul.mubr.bf16.gmra.mxu0 %v124
    %v457 = vpop.f32.mrf.mxu0
    %v458 = vadd.f32 %v373, %v457
    %v459 = vpop.f32.mrf.mxu0
    %v460 = vpop.f32.mrf.mxu0
    %v461 = vadd.f32 %v373, %v460
    %v462 = vpop.f32.mrf.mxu0
    %463 = vdwg.mxu0
    %v464 = vpack.c.bf16 %v237, %v234
    %v465 = vpack.c.bf16 %v349, %v346
    %v466 = vld [vmem:[#allocation7] sm:$0xff]
    %v467 = vld [vmem:[#allocation7 + $0x8] sm:$0xff]
    %468 = vmatprep.subr.bf16.mxu0 0
    %469 = vmatpush1.bf16.xpose.msra.mxu0 0
    %470 = vmatprep.subr.bf16.mxu0 0
    %471 = vmatpush1.bf16.xpose.msra.mxu0 0
    %472 = vmatprep.subr.bf16.mxu0 0
    %473 = vmatpush1.bf16.xpose.msra.mxu0 0
    %474 = vmatprep.subr.bf16.mxu0 0
    %475 = vmatpush1.bf16.xpose.msra.mxu0 0
    %476 = vmatprep.subr.bf16.mxu0 0
    %477 = vmatpush1.bf16.xpose.msra.mxu0 0
    %478 = vmatprep.subr.bf16.mxu0 0
    %479 = vmatpush1.bf16.xpose.msra.mxu0 0
    %480 = vmatprep.subr.bf16.mxu0 0
    %481 = vmatpush1.bf16.xpose.msra.mxu0 0
    %482 = vmatprep.subr.bf16.mxu0 0
    %483 = vmatpush1.bf16.xpose.msra.mxu0 %v465
    %484 = vmatprep.subr.bf16.mxu0 0
    %485 = vmatpush2.bf16.xpose.msra.mxu0 0
    %486 = vmatprep.subr.bf16.mxu0 0
    %487 = vmatpush2.bf16.xpose.msra.mxu0 0
    %488 = vmatprep.subr.bf16.mxu0 0
    %489 = vmatpush2.bf16.xpose.msra.mxu0 0
    %490 = vmatprep.subr.bf16.mxu0 0
    %491 = vmatpush2.bf16.xpose.msra.mxu0 0
    %492 = vmatprep.subr.bf16.mxu0 0
    %493 = vmatpush2.bf16.xpose.msra.mxu0 0
    %494 = vmatprep.subr.bf16.mxu0 0
    %495 = vmatpush2.bf16.xpose.msra.mxu0 0
    %496 = vmatprep.subr.bf16.mxu0 0
    %497 = vmatpush2.bf16.xpose.msra.mxu0 0
    %498 = vmatprep.subr.bf16.mxu0 0
    %499 = vmatpush2.bf16.xpose.msra.mxu0 0
    %500 = vmatprep.mubr.bf16.mxu0 0
    %501 = vmatmul.mubr.bf16.gmra.mxu0 %v464
    %v502 = vpop.f32.mrf.mxu0
    %v503 = vadd.f32 %v466, %v502
    %v504 = vpop.f32.mrf.mxu0
    %v505 = vpop.f32.mrf.mxu0
    %v506 = vadd.f32 %v467, %v505
    %v507 = vpop.f32.mrf.mxu0
    %508 = vdwg.mxu0
    %vm509 = vcmask 130048
    %v510 = vsel %vm509, %v503, -inf
    %511 = vmax.xlane.f32.xlu0 %v510
    %v512 = vpop.xlane.xlu0 %511
    %v513 = vsel %vm509, %v506, -inf
    %514 = vmax.xlane.f32.xlu0 %v513
    %v515 = vpop.xlane.xlu0 %514
    %v516 = vsub.f32 %v503, %v512
    %v517 = vsub.f32 %v506, %v515
    %v518 = vmul.f32 %v516, 1.442695
    %v519 = vpow.pop %v518
    %v520 = vmul.f32 %v517, 1.442695
    %v521 = vpow.pop %v520
    %v522 = vsel %vm509, %v519, 0.0
    %523 = vadd.xlane.f32.xlu0 %v522
    %v524 = vpop.xlane.xlu0 %523
    %v525 = vsel %vm509, %v521, 0.0
    %526 = vadd.xlane.f32.xlu0 %v525
    %v527 = vpop.xlane.xlu0 %526
    %v528 = vrcp.pop %v524
    %v529 = vrcp.pop %v527
    %v530 = vmul.f32 %v519, %v528
    %v531 = vmul.f32 %v521, %v529
    %v532 = vpack.c.bf16 %v531, %v530
    %v533 = vpack.c.bf16 %v461, %v458
    %v535 = vsel %vm509, %v532, 0
    %537 = vmatprep.subr.bf16.mxu0 0
    %538 = vmatpush1.bf16.msra.mxu0 0
    %539 = vmatprep.subr.bf16.mxu0 0
    %540 = vmatpush1.bf16.msra.mxu0 0
    %541 = vmatprep.subr.bf16.mxu0 0
    %542 = vmatpush1.bf16.msra.mxu0 0
    %543 = vmatprep.subr.bf16.mxu0 0
    %544 = vmatpush1.bf16.msra.mxu0 0
    %545 = vmatprep.subr.bf16.mxu0 0
    %546 = vmatpush1.bf16.msra.mxu0 0
    %547 = vmatprep.subr.bf16.mxu0 0
    %548 = vmatpush1.bf16.msra.mxu0 0
    %549 = vmatprep.subr.bf16.mxu0 0
    %550 = vmatpush1.bf16.msra.mxu0 0
    %551 = vmatprep.subr.bf16.mxu0 0
    %552 = vmatpush1.bf16.msra.mxu0 %v533
    %553 = vmatprep.subr.bf16.mxu0 0
    %554 = vmatpush2.bf16.msra.mxu0 0
    %555 = vmatprep.subr.bf16.mxu0 0
    %556 = vmatpush2.bf16.msra.mxu0 0
    %557 = vmatprep.subr.bf16.mxu0 0
    %558 = vmatpush2.bf16.msra.mxu0 0
    %559 = vmatprep.subr.bf16.mxu0 0
    %560 = vmatpush2.bf16.msra.mxu0 0
    %561 = vmatprep.subr.bf16.mxu0 0
    %562 = vmatpush2.bf16.msra.mxu0 0
    %563 = vmatprep.subr.bf16.mxu0 0
    %564 = vmatpush2.bf16.msra.mxu0 0
    %565 = vmatprep.subr.bf16.mxu0 0
    %566 = vmatpush2.bf16.msra.mxu0 0
    %567 = vmatprep.subr.bf16.mxu0 0
    %568 = vmatpush2.bf16.msra.mxu0 0
    %569 = vmatprep.mubr.bf16.mxu0 0
    %570 = vmatmul.mubr.bf16.gmra.mxu0 %v535
    %v571 = vpop.f32.mrf.mxu0
    %v572 = vadd.f32 %v122, %v571
    %v573 = vpop.f32.mrf.mxu0
    %v574 = vpop.f32.mrf.mxu0
    %v575 = vadd.f32 %v123, %v574
    %v576 = vpop.f32.mrf.mxu0
    %577 = vdwg.mxu0
    %578 = vadd.xlane.f32.xlu0 %v572
    %v579 = vpop.xlane.xlu0 %578
    %580 = vadd.xlane.f32.xlu0 %v575
    %v581 = vpop.xlane.xlu0 %580
    %v582 = vmul.f32 %v579, 0.03125
    %v583 = vmul.f32 %v581, 0.03125
    %v584 = vsub.f32 %v572, %v582
    %v585 = vsub.f32 %v575, %v583
    %v586 = vmul.f32 %v584, %v584
    %v587 = vmul.f32 %v585, %v585
    %588 = vadd.xlane.f32.xlu0 %v586
    %v589 = vpop.xlane.xlu0 %588
    %590 = vadd.xlane.f32.xlu0 %v587
    %v591 = vpop.xlane.xlu0 %590
    %v592 = vmul.f32 %v582, %v582
    %v593 = vmul.f32 %v583, %v583
    %v594 = vmul.f32 %v592, 96.0
    %v595 = vmul.f32 %v593, 96.0
    %v596 = vsub.f32 %v589, %v594
    %v597 = vsub.f32 %v591, %v595
    %v598 = vmul.f32 %v596, 0.03125
    %v599 = vmul.f32 %v597, 0.03125
    %v600 = vadd.f32 %v598, 1e-05
    %v601 = vadd.f32 %v599, 1e-05
    %v602 = vrsqrt.pop %v600
    %v603 = vrsqrt.pop %v601
    %v604 = vmul.f32 %v584, %v602
    %v605 = vmul.f32 %v585, %v603
    %v606 = vld [vmem:[%s9] sm:$0x1]
    %v608 = vlaneseq
    %v609 = vshrl.u32 %v608, 7
    %v610 = vsub.s32 0, %v609
    %v611 = vrot.slane %v606, %v610
    %v613 = vmul.f32 %v604, %v611
    %v614 = vmul.f32 %v605, %v611
    %v615 = vld [vmem:[%s10] sm:$0x1]
    %v617 = vlaneseq
    %v618 = vshrl.u32 %v617, 7
    %v619 = vsub.s32 0, %v618
    %v620 = vrot.slane %v615, %v619
    %v622 = vadd.f32 %v613, %v620
    %v623 = vadd.f32 %v614, %v620
    %624 = vst [vmem:[#allocation13] sm:$0xff] %v622
    %625 = vst [vmem:[#allocation13 + $0x8] sm:$0xff] %v623
    // Predicated region
    $region70: #{tpu_custom_call.1} parent=1 // pred_check
      _
    $region71: #{tpu_custom_call.1} parent=1 // pred_check_branch
      %627 = sbr.rel (0) target = $region73
    $region72: #{tpu_custom_call.1} parent=1 // pred_region
      %s629 = ssub.s32 256, 256
      %630 = vsyncadd [#allocation4], %s629
      %s631 = sshll.u32 [#allocation13], 4
      %s632 = int_to_ptr.vmem [resolvable:$true] %s631
      %637 = dma.vmem_to_hbm [thread:$0]  %s632, 256, %s11, [#allocation4], 128, 128, 8
    $region73: #{tpu_custom_call.1} parent=1 // pred_fallthru
      _
    // Predicated region
    $region74: #{tpu_custom_call.1} parent=1 // pred_check
      _
    $region75: #{tpu_custom_call.1} parent=1 // pred_check_branch
      %639 = sbr.rel (0) target = $region77
    $region76: #{tpu_custom_call.1} parent=1 // pred_region
      %640 = dma.done [#allocation4], 256
    $region77: #{tpu_custom_call.1} parent=1 // pred_fallthru
      _
    %641 = vsyncpa [#allocation3], 1
    %642 = vsyncpa [#allocation6], 1
    %643 = vsyncpa [#allocation9], 1
    %644 = vsyncpa [#allocation12], 1
    %645 = vsyncpa [#allocation4], 1

</llo_original>
